<compile_context>
chip_gen: v5e
topology: v5e:2x2
jax: 0.10.0
libtpu: 0.0.40
codegen_flags: <defaults>
</compile_context>

<pallas_src>
import functools

import jax
import jax.numpy as jnp
from jax import lax
from jax.experimental import pallas as pl
from jax.experimental.pallas import tpu as pltpu


def _round_up(x, m):
    return (x + m - 1) // m * m


def _multi_domain_ce_kernel(x_ref, t_ref, out_ref, *, class_sizes, offsets,
                            n_rows):
    """One row-block of fused multi-domain cross entropy.

    x_ref:   (block_n, C_total) concatenated logits (all domains on lane axis)
    t_ref:   (block_n, num_domains) int32 targets, -1 == ignore
    out_ref: (8, 128) f32 partials tile:
             sublane 0, lane d -> sum of per-row NLL for domain d
             sublane 1, lane d -> number of valid (non-ignored) rows, domain d
    """
    x = x_ref[...].astype(jnp.float32)                       # (bn, Ct)
    t = t_ref[...]                                           # (bn, D) int32
    bn, ct = x.shape
    nd = len(class_sizes)

    col = lax.broadcasted_iota(jnp.int32, (bn, ct), 1)       # (bn, Ct)
    row = lax.broadcasted_iota(jnp.int32, (bn, 1), 0)        # (bn, 1)
    row_ok = (pl.program_id(0) * bn + row) < n_rows          # ragged-tail mask

    sub = lax.broadcasted_iota(jnp.int32, (8, 128), 0)
    lane = lax.broadcasted_iota(jnp.int32, (8, 128), 1)
    tile = jnp.zeros((8, 128), jnp.float32)

    for d in range(nd):                # few domains -> unrolled at trace time
        off, cd = offsets[d], class_sizes[d]
        dom = (col >= off) & (col < off + cd)                # (bn, Ct)

        # Numerically-stable logsumexp restricted to this domain's columns.
        xm = jnp.where(dom, x, -jnp.inf)
        m = jnp.max(xm, axis=-1, keepdims=True)              # (bn, 1)
        s = jnp.sum(jnp.exp(xm - m), axis=-1, keepdims=True)  # (bn, 1)
        lse = m + jnp.log(s)

        td = t[:, d:d + 1]                                   # (bn, 1)
        valid = (td != -1) & row_ok                          # (bn, 1)
        gcol = off + jnp.where(valid, td, 0)                 # safe gather col
        tgt = jnp.sum(jnp.where(col == gcol, x, 0.0),
                      axis=-1, keepdims=True)                # (bn, 1)

        per_row = lse - tgt                                  # -log_softmax[tgt]
        loss_sum = jnp.sum(jnp.where(valid, per_row, 0.0))
        count = jnp.sum(jnp.where(valid, 1.0, 0.0))

        tile = jnp.where((sub == 0) & (lane == d), loss_sum, tile)
        tile = jnp.where((sub == 1) & (lane == d), count, tile)

    out_ref[...] = tile


@functools.partial(jax.jit, static_argnums=(2,))
def _fused_multi_domain_ce(x_cat, target, class_sizes):
    """x_cat: (N, C_total) logits, target: (N, D) int32 -> (D,) f32 mean CE."""
    n, c_total = x_cat.shape
    nd = len(class_sizes)
    assert target.shape == (n, nd)
    assert nd <= 128, "partials tile packs one domain per lane"

    offsets = []
    acc = 0
    for c in class_sizes:
        offsets.append(acc)
        acc += c
    offsets = tuple(offsets)

    # Row-block sizing: keep double-buffered logit blocks well under the
    # smallest scoped-VMEM default (v5e 16 MiB), multiple of 8 sublanes.
    bytes_per_row = c_total * x_cat.dtype.itemsize
    budget = 8 * 1024 * 1024
    block_n = (budget // (2 * bytes_per_row)) // 8 * 8
    block_n = max(8, min(1024, block_n))
    block_n = min(block_n, _round_up(n, 8))
    num_blocks = -(-n // block_n)

    kernel = functools.partial(
        _multi_domain_ce_kernel,
        class_sizes=class_sizes, offsets=offsets, n_rows=n)

    partials = pl.pallas_call(
        kernel,
        out_shape=jax.ShapeDtypeStruct((num_blocks * 8, 128), jnp.float32),
        grid=(num_blocks,),
        in_specs=[
            pl.BlockSpec((block_n, c_total), lambda i: (i, 0)),
            pl.BlockSpec((block_n, nd), lambda i: (i, 0)),
        ],
        out_specs=pl.BlockSpec((8, 128), lambda i: (i, 0)),
        compiler_params=pltpu.CompilerParams(
            dimension_semantics=("parallel",)),
    )(x_cat, target)

    p = partials.reshape(num_blocks, 8, 128)
    loss_sum = jnp.sum(p[:, 0, :nd], axis=0)     # (D,)
    count = jnp.sum(p[:, 1, :nd], axis=0)        # (D,)
    # Mean over non-ignored rows; NaN if a domain has zero valid rows
    # (matches torch.nn.functional.cross_entropy with ignore_index).
    return loss_sum / count


def multi_domain_cross_entropy_with_logits(xs, target):
    """JAX/Pallas equivalent of MultiDomainCrossEntropyWithLogits.forward.

    xs:     list of (N, C_i) logits arrays (one per domain)
    target: (N, num_domains) int array; target[:, i] labels domain i, -1 ignored.
    Returns dict {'loss_i': scalar f32}.
    """
    class_sizes = tuple(int(x.shape[-1]) for x in xs)
    common = jnp.result_type(*[x.dtype for x in xs])
    x_cat = jnp.concatenate([x.astype(common) for x in xs], axis=-1)
    t = target.astype(jnp.int32)
    losses = _fused_multi_domain_ce(x_cat, t, class_sizes)
    return {"loss_{}".format(i): losses[i] for i in range(len(xs))}


def _reference_ce(x, t):
    """Pure-JAX reference (mean CE, ignore_index=-1) for validation."""
    logp = jax.nn.log_softmax(x.astype(jnp.float32), axis=-1)
    valid = t != -1
    safe_t = jnp.where(valid, t, 0)
    nll = -jnp.take_along_axis(logp, safe_t[:, None], axis=-1)[:, 0]
    return jnp.sum(jnp.where(valid, nll, 0.0)) / jnp.sum(valid.astype(jnp.float32))


if __name__ == "__main__":
    key = jax.random.PRNGKey(0)
    n = 8                       # batch
    num_domains = 3
    classes = [8, 16, 32]       # per-domain number of classes

    keys = jax.random.split(key, num_domains + 1)
    xs = [
        jax.random.normal(keys[i], (n, classes[i]), dtype=jnp.float32)
        for i in range(num_domains)
    ]
    tgt_cols = []
    for i in range(num_domains):
        col = jax.random.randint(keys[num_domains], (n,), 0, classes[i])
        tgt_cols.append(col)
    target = jnp.stack(tgt_cols, axis=1).astype(jnp.int32)
    target = target.at[0, 1].set(-1)   # ignore one sample in domain 1

    losses = multi_domain_cross_entropy_with_logits(xs, target)
    losses = jax.block_until_ready(losses)

    # silent correctness check against a pure-JAX reference
    for i, x in enumerate(xs):
        ref = _reference_ce(x, target[:, i])
        got = losses["loss_{}".format(i)]
        assert jnp.allclose(got, ref, atol=1e-5, rtol=1e-5), (i, got, ref)

    print("KERNEL_OK")
</pallas_src>

<mosaic_0001>
module attributes {stable_mosaic.version = 11 : i64} {
  func.func @_multi_domain_ce_kernel(%arg0: i32, %arg1: memref<8x56xf32, #tpu.memory_space<vmem>>, %arg2: memref<8x3xi32, #tpu.memory_space<vmem>>, %arg3: memref<8x128xf32, #tpu.memory_space<vmem>>) attributes {dimension_semantics = [#tpu.dimension_semantics<parallel>], iteration_bounds = array<i64: 1>, scalar_prefetch = 0 : i64, scratch_operands = 0 : i64, tpu.core_type = #tpu.core_type<tc>, window_params = [{transform_indices = @transform_0, window_bounds = array<i64: 8, 56>}, {transform_indices = @transform_1, window_bounds = array<i64: 8, 3>}, {transform_indices = @transform_2, window_bounds = array<i64: 8, 128>}]} {
    %c0 = arith.constant 0 : index
    %c0_0 = arith.constant 0 : index
    %0 = vector.load %arg1[%c0, %c0_0] : memref<8x56xf32, #tpu.memory_space<vmem>>, vector<8x56xf32>
    %c0_1 = arith.constant 0 : index
    %c0_2 = arith.constant 0 : index
    %1 = vector.load %arg2[%c0_1, %c0_2] : memref<8x3xi32, #tpu.memory_space<vmem>>, vector<8x3xi32>
    %2 = tpu.iota {dimensions = array<i32: 1>} : vector<8x56xi32>
    %3 = tpu.iota {dimensions = array<i32: 0>} : vector<8x1xi32>
    %c8_i32 = arith.constant 8 : i32
    %4 = arith.muli %arg0, %c8_i32 : i32
    %5 = vector.broadcast %4 : i32 to vector<8x1xi32>
    %6 = arith.addi %5, %3 : vector<8x1xi32>
    %c8_i32_3 = arith.constant 8 : i32
    %7 = vector.broadcast %c8_i32_3 : i32 to vector<8x1xi32>
    %8 = arith.cmpi slt, %6, %7 : vector<8x1xi32>
    %9 = tpu.iota {dimensions = array<i32: 0>} : vector<8x128xi32>
    %10 = tpu.iota {dimensions = array<i32: 1>} : vector<8x128xi32>
    %cst = arith.constant 0.000000e+00 : f32
    %11 = vector.broadcast %cst : f32 to vector<8x128xf32>
    %c0_i32 = arith.constant 0 : i32
    %12 = vector.broadcast %c0_i32 : i32 to vector<8x56xi32>
    %13 = arith.cmpi sge, %2, %12 : vector<8x56xi32>
    %c8_i32_4 = arith.constant 8 : i32
    %14 = vector.broadcast %c8_i32_4 : i32 to vector<8x56xi32>
    %15 = arith.cmpi slt, %2, %14 : vector<8x56xi32>
    %16 = arith.andi %13, %15 : vector<8x56xi1>
    %cst_5 = arith.constant 0xFF800000 : f32
    %17 = vector.broadcast %cst_5 : f32 to vector<8x56xf32>
    %18 = arith.select %16, %0, %17 : vector<8x56xi1>, vector<8x56xf32>
    %cst_6 = arith.constant dense<0xFF800000> : vector<8xf32>
    %19 = vector.multi_reduction <maximumf>, %18, %cst_6 [1] : vector<8x56xf32> to vector<8xf32>
    %20 = vector.shape_cast %19 : vector<8xf32> to vector<8x1xf32>
    %21 = vector.broadcast %20 : vector<8x1xf32> to vector<8x56xf32>
    %22 = arith.subf %18, %21 : vector<8x56xf32>
    %23 = math.exp %22 : vector<8x56xf32>
    %cst_7 = arith.constant dense<0.000000e+00> : vector<8xf32>
    %24 = vector.multi_reduction <add>, %23, %cst_7 [1] : vector<8x56xf32> to vector<8xf32>
    %25 = vector.shape_cast %24 : vector<8xf32> to vector<8x1xf32>
    %26 = math.log %25 : vector<8x1xf32>
    %27 = arith.addf %20, %26 : vector<8x1xf32>
    %28 = vector.extract_strided_slice %1 {offsets = [0, 0], sizes = [8, 1], strides = [1, 1]} : vector<8x3xi32> to vector<8x1xi32>
    %c-1_i32 = arith.constant -1 : i32
    %29 = vector.broadcast %c-1_i32 : i32 to vector<8x1xi32>
    %30 = arith.cmpi ne, %28, %29 : vector<8x1xi32>
    %31 = arith.andi %30, %8 : vector<8x1xi1>
    %c0_i32_8 = arith.constant 0 : i32
    %32 = vector.broadcast %c0_i32_8 : i32 to vector<8x1xi32>
    %33 = arith.select %31, %28, %32 : vector<8x1xi1>, vector<8x1xi32>
    %c0_i32_9 = arith.constant 0 : i32
    %34 = vector.broadcast %c0_i32_9 : i32 to vector<8x1xi32>
    %35 = arith.addi %34, %33 : vector<8x1xi32>
    %36 = vector.broadcast %35 : vector<8x1xi32> to vector<8x56xi32>
    %37 = arith.cmpi eq, %2, %36 : vector<8x56xi32>
    %cst_10 = arith.constant 0.000000e+00 : f32
    %38 = vector.broadcast %cst_10 : f32 to vector<8x56xf32>
    %39 = arith.select %37, %0, %38 : vector<8x56xi1>, vector<8x56xf32>
    %cst_11 = arith.constant dense<0.000000e+00> : vector<8xf32>
    %40 = vector.multi_reduction <add>, %39, %cst_11 [1] : vector<8x56xf32> to vector<8xf32>
    %41 = vector.shape_cast %40 : vector<8xf32> to vector<8x1xf32>
    %42 = arith.subf %27, %41 : vector<8x1xf32>
    %cst_12 = arith.constant 0.000000e+00 : f32
    %43 = vector.broadcast %cst_12 : f32 to vector<8x1xf32>
    %44 = arith.select %31, %42, %43 : vector<8x1xi1>, vector<8x1xf32>
    %45 = vector.shape_cast %44 : vector<8x1xf32> to vector<1x8x1xf32>
    %cst_13 = arith.constant dense<0.000000e+00> : vector<1xf32>
    %46 = vector.multi_reduction <add>, %45, %cst_13 [1, 2] : vector<1x8x1xf32> to vector<1xf32>
    %47 = vector.shape_cast %46 : vector<1xf32> to vector<1x1x1xf32>
    %48 = vector.extract %47[0, 0, 0] : f32 from vector<1x1x1xf32>
    %cst_14 = arith.constant 1.000000e+00 : f32
    %cst_15 = arith.constant 0.000000e+00 : f32
    %49 = vector.broadcast %cst_14 : f32 to vector<8x1xf32>
    %50 = vector.broadcast %cst_15 : f32 to vector<8x1xf32>
    %51 = arith.select %31, %49, %50 : vector<8x1xi1>, vector<8x1xf32>
    %52 = vector.shape_cast %51 : vector<8x1xf32> to vector<1x8x1xf32>
    %cst_16 = arith.constant dense<0.000000e+00> : vector<1xf32>
    %53 = vector.multi_reduction <add>, %52, %cst_16 [1, 2] : vector<1x8x1xf32> to vector<1xf32>
    %54 = vector.shape_cast %53 : vector<1xf32> to vector<1x1x1xf32>
    %55 = vector.extract %54[0, 0, 0] : f32 from vector<1x1x1xf32>
    %c0_i32_17 = arith.constant 0 : i32
    %56 = vector.broadcast %c0_i32_17 : i32 to vector<8x128xi32>
    %57 = arith.cmpi eq, %9, %56 : vector<8x128xi32>
    %c0_i32_18 = arith.constant 0 : i32
    %58 = vector.broadcast %c0_i32_18 : i32 to vector<8x128xi32>
    %59 = arith.cmpi eq, %10, %58 : vector<8x128xi32>
    %60 = arith.andi %57, %59 : vector<8x128xi1>
    %61 = vector.broadcast %48 : f32 to vector<8x128xf32>
    %62 = arith.select %60, %61, %11 : vector<8x128xi1>, vector<8x128xf32>
    %c1_i32 = arith.constant 1 : i32
    %63 = vector.broadcast %c1_i32 : i32 to vector<8x128xi32>
    %64 = arith.cmpi eq, %9, %63 : vector<8x128xi32>
    %c0_i32_19 = arith.constant 0 : i32
    %65 = vector.broadcast %c0_i32_19 : i32 to vector<8x128xi32>
    %66 = arith.cmpi eq, %10, %65 : vector<8x128xi32>
    %67 = arith.andi %64, %66 : vector<8x128xi1>
    %68 = vector.broadcast %55 : f32 to vector<8x128xf32>
    %69 = arith.select %67, %68, %62 : vector<8x128xi1>, vector<8x128xf32>
    %c8_i32_20 = arith.constant 8 : i32
    %70 = vector.broadcast %c8_i32_20 : i32 to vector<8x56xi32>
    %71 = arith.cmpi sge, %2, %70 : vector<8x56xi32>
    %c24_i32 = arith.constant 24 : i32
    %72 = vector.broadcast %c24_i32 : i32 to vector<8x56xi32>
    %73 = arith.cmpi slt, %2, %72 : vector<8x56xi32>
    %74 = arith.andi %71, %73 : vector<8x56xi1>
    %cst_21 = arith.constant 0xFF800000 : f32
    %75 = vector.broadcast %cst_21 : f32 to vector<8x56xf32>
    %76 = arith.select %74, %0, %75 : vector<8x56xi1>, vector<8x56xf32>
    %cst_22 = arith.constant dense<0xFF800000> : vector<8xf32>
    %77 = vector.multi_reduction <maximumf>, %76, %cst_22 [1] : vector<8x56xf32> to vector<8xf32>
    %78 = vector.shape_cast %77 : vector<8xf32> to vector<8x1xf32>
    %79 = vector.broadcast %78 : vector<8x1xf32> to vector<8x56xf32>
    %80 = arith.subf %76, %79 : vector<8x56xf32>
    %81 = math.exp %80 : vector<8x56xf32>
    %cst_23 = arith.constant dense<0.000000e+00> : vector<8xf32>
    %82 = vector.multi_reduction <add>, %81, %cst_23 [1] : vector<8x56xf32> to vector<8xf32>
    %83 = vector.shape_cast %82 : vector<8xf32> to vector<8x1xf32>
    %84 = math.log %83 : vector<8x1xf32>
    %85 = arith.addf %78, %84 : vector<8x1xf32>
    %86 = vector.extract_strided_slice %1 {offsets = [0, 1], sizes = [8, 1], strides = [1, 1]} : vector<8x3xi32> to vector<8x1xi32>
    %c-1_i32_24 = arith.constant -1 : i32
    %87 = vector.broadcast %c-1_i32_24 : i32 to vector<8x1xi32>
    %88 = arith.cmpi ne, %86, %87 : vector<8x1xi32>
    %89 = arith.andi %88, %8 : vector<8x1xi1>
    %c0_i32_25 = arith.constant 0 : i32
    %90 = vector.broadcast %c0_i32_25 : i32 to vector<8x1xi32>
    %91 = arith.select %89, %86, %90 : vector<8x1xi1>, vector<8x1xi32>
    %c8_i32_26 = arith.constant 8 : i32
    %92 = vector.broadcast %c8_i32_26 : i32 to vector<8x1xi32>
    %93 = arith.addi %92, %91 : vector<8x1xi32>
    %94 = vector.broadcast %93 : vector<8x1xi32> to vector<8x56xi32>
    %95 = arith.cmpi eq, %2, %94 : vector<8x56xi32>
    %cst_27 = arith.constant 0.000000e+00 : f32
    %96 = vector.broadcast %cst_27 : f32 to vector<8x56xf32>
    %97 = arith.select %95, %0, %96 : vector<8x56xi1>, vector<8x56xf32>
    %cst_28 = arith.constant dense<0.000000e+00> : vector<8xf32>
    %98 = vector.multi_reduction <add>, %97, %cst_28 [1] : vector<8x56xf32> to vector<8xf32>
    %99 = vector.shape_cast %98 : vector<8xf32> to vector<8x1xf32>
    %100 = arith.subf %85, %99 : vector<8x1xf32>
    %cst_29 = arith.constant 0.000000e+00 : f32
    %101 = vector.broadcast %cst_29 : f32 to vector<8x1xf32>
    %102 = arith.select %89, %100, %101 : vector<8x1xi1>, vector<8x1xf32>
    %103 = vector.shape_cast %102 : vector<8x1xf32> to vector<1x8x1xf32>
    %cst_30 = arith.constant dense<0.000000e+00> : vector<1xf32>
    %104 = vector.multi_reduction <add>, %103, %cst_30 [1, 2] : vector<1x8x1xf32> to vector<1xf32>
    %105 = vector.shape_cast %104 : vector<1xf32> to vector<1x1x1xf32>
    %106 = vector.extract %105[0, 0, 0] : f32 from vector<1x1x1xf32>
    %cst_31 = arith.constant 1.000000e+00 : f32
    %cst_32 = arith.constant 0.000000e+00 : f32
    %107 = vector.broadcast %cst_31 : f32 to vector<8x1xf32>
    %108 = vector.broadcast %cst_32 : f32 to vector<8x1xf32>
    %109 = arith.select %89, %107, %108 : vector<8x1xi1>, vector<8x1xf32>
    %110 = vector.shape_cast %109 : vector<8x1xf32> to vector<1x8x1xf32>
    %cst_33 = arith.constant dense<0.000000e+00> : vector<1xf32>
    %111 = vector.multi_reduction <add>, %110, %cst_33 [1, 2] : vector<1x8x1xf32> to vector<1xf32>
    %112 = vector.shape_cast %111 : vector<1xf32> to vector<1x1x1xf32>
    %113 = vector.extract %112[0, 0, 0] : f32 from vector<1x1x1xf32>
    %c0_i32_34 = arith.constant 0 : i32
    %114 = vector.broadcast %c0_i32_34 : i32 to vector<8x128xi32>
    %115 = arith.cmpi eq, %9, %114 : vector<8x128xi32>
    %c1_i32_35 = arith.constant 1 : i32
    %116 = vector.broadcast %c1_i32_35 : i32 to vector<8x128xi32>
    %117 = arith.cmpi eq, %10, %116 : vector<8x128xi32>
    %118 = arith.andi %115, %117 : vector<8x128xi1>
    %119 = vector.broadcast %106 : f32 to vector<8x128xf32>
    %120 = arith.select %118, %119, %69 : vector<8x128xi1>, vector<8x128xf32>
    %c1_i32_36 = arith.constant 1 : i32
    %121 = vector.broadcast %c1_i32_36 : i32 to vector<8x128xi32>
    %122 = arith.cmpi eq, %9, %121 : vector<8x128xi32>
    %c1_i32_37 = arith.constant 1 : i32
    %123 = vector.broadcast %c1_i32_37 : i32 to vector<8x128xi32>
    %124 = arith.cmpi eq, %10, %123 : vector<8x128xi32>
    %125 = arith.andi %122, %124 : vector<8x128xi1>
    %126 = vector.broadcast %113 : f32 to vector<8x128xf32>
    %127 = arith.select %125, %126, %120 : vector<8x128xi1>, vector<8x128xf32>
    %c24_i32_38 = arith.constant 24 : i32
    %128 = vector.broadcast %c24_i32_38 : i32 to vector<8x56xi32>
    %129 = arith.cmpi sge, %2, %128 : vector<8x56xi32>
    %c56_i32 = arith.constant 56 : i32
    %130 = vector.broadcast %c56_i32 : i32 to vector<8x56xi32>
    %131 = arith.cmpi slt, %2, %130 : vector<8x56xi32>
    %132 = arith.andi %129, %131 : vector<8x56xi1>
    %cst_39 = arith.constant 0xFF800000 : f32
    %133 = vector.broadcast %cst_39 : f32 to vector<8x56xf32>
    %134 = arith.select %132, %0, %133 : vector<8x56xi1>, vector<8x56xf32>
    %cst_40 = arith.constant dense<0xFF800000> : vector<8xf32>
    %135 = vector.multi_reduction <maximumf>, %134, %cst_40 [1] : vector<8x56xf32> to vector<8xf32>
    %136 = vector.shape_cast %135 : vector<8xf32> to vector<8x1xf32>
    %137 = vector.broadcast %136 : vector<8x1xf32> to vector<8x56xf32>
    %138 = arith.subf %134, %137 : vector<8x56xf32>
    %139 = math.exp %138 : vector<8x56xf32>
    %cst_41 = arith.constant dense<0.000000e+00> : vector<8xf32>
    %140 = vector.multi_reduction <add>, %139, %cst_41 [1] : vector<8x56xf32> to vector<8xf32>
    %141 = vector.shape_cast %140 : vector<8xf32> to vector<8x1xf32>
    %142 = math.log %141 : vector<8x1xf32>
    %143 = arith.addf %136, %142 : vector<8x1xf32>
    %144 = vector.extract_strided_slice %1 {offsets = [0, 2], sizes = [8, 1], strides = [1, 1]} : vector<8x3xi32> to vector<8x1xi32>
    %c-1_i32_42 = arith.constant -1 : i32
    %145 = vector.broadcast %c-1_i32_42 : i32 to vector<8x1xi32>
    %146 = arith.cmpi ne, %144, %145 : vector<8x1xi32>
    %147 = arith.andi %146, %8 : vector<8x1xi1>
    %c0_i32_43 = arith.constant 0 : i32
    %148 = vector.broadcast %c0_i32_43 : i32 to vector<8x1xi32>
    %149 = arith.select %147, %144, %148 : vector<8x1xi1>, vector<8x1xi32>
    %c24_i32_44 = arith.constant 24 : i32
    %150 = vector.broadcast %c24_i32_44 : i32 to vector<8x1xi32>
    %151 = arith.addi %150, %149 : vector<8x1xi32>
    %152 = vector.broadcast %151 : vector<8x1xi32> to vector<8x56xi32>
    %153 = arith.cmpi eq, %2, %152 : vector<8x56xi32>
    %cst_45 = arith.constant 0.000000e+00 : f32
    %154 = vector.broadcast %cst_45 : f32 to vector<8x56xf32>
    %155 = arith.select %153, %0, %154 : vector<8x56xi1>, vector<8x56xf32>
    %cst_46 = arith.constant dense<0.000000e+00> : vector<8xf32>
    %156 = vector.multi_reduction <add>, %155, %cst_46 [1] : vector<8x56xf32> to vector<8xf32>
    %157 = vector.shape_cast %156 : vector<8xf32> to vector<8x1xf32>
    %158 = arith.subf %143, %157 : vector<8x1xf32>
    %cst_47 = arith.constant 0.000000e+00 : f32
    %159 = vector.broadcast %cst_47 : f32 to vector<8x1xf32>
    %160 = arith.select %147, %158, %159 : vector<8x1xi1>, vector<8x1xf32>
    %161 = vector.shape_cast %160 : vector<8x1xf32> to vector<1x8x1xf32>
    %cst_48 = arith.constant dense<0.000000e+00> : vector<1xf32>
    %162 = vector.multi_reduction <add>, %161, %cst_48 [1, 2] : vector<1x8x1xf32> to vector<1xf32>
    %163 = vector.shape_cast %162 : vector<1xf32> to vector<1x1x1xf32>
    %164 = vector.extract %163[0, 0, 0] : f32 from vector<1x1x1xf32>
    %cst_49 = arith.constant 1.000000e+00 : f32
    %cst_50 = arith.constant 0.000000e+00 : f32
    %165 = vector.broadcast %cst_49 : f32 to vector<8x1xf32>
    %166 = vector.broadcast %cst_50 : f32 to vector<8x1xf32>
    %167 = arith.select %147, %165, %166 : vector<8x1xi1>, vector<8x1xf32>
    %168 = vector.shape_cast %167 : vector<8x1xf32> to vector<1x8x1xf32>
    %cst_51 = arith.constant dense<0.000000e+00> : vector<1xf32>
    %169 = vector.multi_reduction <add>, %168, %cst_51 [1, 2] : vector<1x8x1xf32> to vector<1xf32>
    %170 = vector.shape_cast %169 : vector<1xf32> to vector<1x1x1xf32>
    %171 = vector.extract %170[0, 0, 0] : f32 from vector<1x1x1xf32>
    %c0_i32_52 = arith.constant 0 : i32
    %172 = vector.broadcast %c0_i32_52 : i32 to vector<8x128xi32>
    %173 = arith.cmpi eq, %9, %172 : vector<8x128xi32>
    %c2_i32 = arith.constant 2 : i32
    %174 = vector.broadcast %c2_i32 : i32 to vector<8x128xi32>
    %175 = arith.cmpi eq, %10, %174 : vector<8x128xi32>
    %176 = arith.andi %173, %175 : vector<8x128xi1>
    %177 = vector.broadcast %164 : f32 to vector<8x128xf32>
    %178 = arith.select %176, %177, %127 : vector<8x128xi1>, vector<8x128xf32>
    %c1_i32_53 = arith.constant 1 : i32
    %179 = vector.broadcast %c1_i32_53 : i32 to vector<8x128xi32>
    %180 = arith.cmpi eq, %9, %179 : vector<8x128xi32>
    %c2_i32_54 = arith.constant 2 : i32
    %181 = vector.broadcast %c2_i32_54 : i32 to vector<8x128xi32>
    %182 = arith.cmpi eq, %10, %181 : vector<8x128xi32>
    %183 = arith.andi %180, %182 : vector<8x128xi1>
    %184 = vector.broadcast %171 : f32 to vector<8x128xf32>
    %185 = arith.select %183, %184, %178 : vector<8x128xi1>, vector<8x128xf32>
    %c0_55 = arith.constant 0 : index
    %c0_56 = arith.constant 0 : index
    %186 = vector.load %arg3[%c0_55, %c0_56] : memref<8x128xf32, #tpu.memory_space<vmem>>, vector<8x128xf32>
    tpu.vector_store %arg3[%c0_55, %c0_56], %185 {strides = array<i32>} : memref<8x128xf32, #tpu.memory_space<vmem>>, vector<8x128xf32>,
    return
  }
  func.func @transform_0(%arg0: i32) -> (i32, i32) {
    %c0_i32 = arith.constant 0 : i32
    %c0_i32_0 = arith.constant 0 : i32
    return %arg0, %c0_i32 : i32, i32
  }
  func.func @transform_1(%arg0: i32) -> (i32, i32) {
    %c0_i32 = arith.constant 0 : i32
    %c0_i32_0 = arith.constant 0 : i32
    return %arg0, %c0_i32 : i32, i32
  }
  func.func @transform_2(%arg0: i32) -> (i32, i32) {
    %c0_i32 = arith.constant 0 : i32
    %c0_i32_0 = arith.constant 0 : i32
    return %arg0, %c0_i32 : i32, i32
  }
}

</mosaic_0001>

<llo_original>
// kernel: _fused_multi_domain_ce.1
$region0: #{_fused_multi_domain_ce.1}
  #allocation0 [shape = 'u32[]', space=smem, size = 0x4, offset = 0x4, fixed_abs, tag = 'smem constant byte address 0x4 - core index']
  #allocation1 [shape = 'u32[72,128]{1,0:T(1,128)}', space=vmem, size = 0x9000, scoped, tag = 'internal scratch']
  %s0 = inlined_call_operand.vmem [shape: f32[8,56], index: 0, kind: input, shape index: {}]
  %s1 = inlined_call_operand.vmem [shape: s32[8,3], index: 1, kind: input, shape index: {}]
  %s2 = inlined_call_operand.vmem [shape: f32[8,128], index: 2, kind: output, shape index: {}]
  %s3 = sld [smem:[#allocation0]]
  $region18: #{_fused_multi_domain_ce.1} parent=0
    _
  %s5 = ssub.s32 1, %s3
  %s6 = scalar_select 0, %s5, %s3
  // Predicated region
  $region2: #{_fused_multi_domain_ce.1} parent=0 // pred_check
    _
  $region3: #{_fused_multi_domain_ce.1} parent=0 // pred_check_branch
    %8 = sbr.rel (0) target = $region5
  $region4: #{_fused_multi_domain_ce.1} parent=0 // pred_region
    _
  $region5: #{_fused_multi_domain_ce.1} parent=0 // pred_fallthru
    _
  // Predicated region
  $region6: #{_fused_multi_domain_ce.1} parent=0 // pred_check
    _
  $region7: #{_fused_multi_domain_ce.1} parent=0 // pred_check_branch
    %10 = sbr.rel (0) target = $region9
  $region8: #{_fused_multi_domain_ce.1} parent=0 // pred_region
    _
  $region9: #{_fused_multi_domain_ce.1} parent=0 // pred_fallthru
    _
  %v11 = vld [vmem:[%s0] sm:$0xff]
  %v12 = vld [vmem:[%s1] sm:$0xff]
  %v13 = vlaneseq
  %v14 = vand.u32 %v13, 127
  %v15 = vlaneseq
  %v16 = vshrl.u32 %v15, 7
  %s17 = smul.u32 0, 8
  %v18 = vstv %s17
  %v19 = vadd.s32 %v18, %v16
  %vm20 = vcmp.lt.s32.totalorder %v19, 8
  %vm21 = vcmp.ge.s32.totalorder %v14, 0
  %vm22 = vcmp.lt.s32.totalorder %v14, 8
  %vm23 = vmand %vm21, %vm22
  %v24 = vsel %vm23, %v11, -inf
  %vm25 = vcmask 457728
  %v26 = vsel %vm25, %v24, -inf
  %27 = vmax.xlane.f32.xlu0 %v26
  %v28 = vpop.xlane.xlu0 %27
  %v29 = vsub.f32 %v24, %v28
  %v30 = vmul.f32 %v29, 1.442695
  %v31 = vpow.pop %v30
  %v32 = vsel %vm25, %v31, 0.0
  %33 = vadd.xlane.f32.xlu0 %v32
  %v34 = vpop.xlane.xlu0 %33
  %v35 = vlog2.pop %v34
  %v36 = vmul.f32 %v35, 0.6931472
  %v37 = vadd.f32 %v28, %v36
  %vm38 = vcmp.ne.s32.totalorder %v12, 4294967295
  %vm39 = vmand %vm38, %vm20
  %v40 = vsel %vm39, %v12, 0
  %41 = vset.pattern.permute.xlu0 0
  %42 = vperm.xlu0 %41, %v40
  %v43 = vpop.permute.xlu0 %42
  %vm44 = vcmp.eq.s32.totalorder %v14, %v43
  %v45 = vsel %vm44, %v11, 0.0
  %v46 = vsel %vm25, %v45, 0.0
  %47 = vadd.xlane.f32.xlu0 %v46
  %v48 = vpop.xlane.xlu0 %47
  %v49 = vsub.f32 %v37, %v48
  %v50 = vsel %vm39, %v49, 0.0
  %vm51 = vcmask 7168
  %v52 = vsel %vm51, %v50, 0.0
  %53 = vadd.xlane.f32.xlu0 %v52
  %v54 = vpop.xlane.xlu0 %53
  %v55 = vrot.slane %v54, 4
  %v56 = vadd.f32 %v54, %v55
  %v57 = vrot.slane %v56, 2
  %v58 = vadd.f32 %v56, %v57
  %v59 = vrot.slane %v58, 1
  %v60 = vadd.f32 %v58, %v59
  %s61 = vtos %v60
  %v62 = vsel %vm39, 1.0, 0.0
  %v63 = vsel %vm51, %v62, 0.0
  %64 = vadd.xlane.f32.xlu0 %v63
  %v65 = vpop.xlane.xlu0 %64
  %v66 = vrot.slane %v65, 4
  %v67 = vadd.f32 %v65, %v66
  %v68 = vrot.slane %v67, 2
  %v69 = vadd.f32 %v67, %v68
  %v70 = vrot.slane %v69, 1
  %v71 = vadd.f32 %v69, %v70
  %s72 = vtos %v71
  %vm73 = vcmp.eq.s32.totalorder %v16, 0
  %vm74 = vcmp.eq.s32.totalorder %v14, 0
  %vm75 = vmand %vm73, %vm74
  %v76 = vstv %s61
  %v77 = vsel %vm75, %v76, 0.0
  %vm78 = vcmp.eq.s32.totalorder %v16, 1
  %vm79 = vmand %vm78, %vm74
  %v80 = vstv %s72
  %v81 = vsel %vm79, %v80, %v77
  %vm82 = vcmp.ge.s32.totalorder %v14, 8
  %vm83 = vcmp.lt.s32.totalorder %v14, 24
  %vm84 = vmand %vm82, %vm83
  %v85 = vsel %vm84, %v11, -inf
  %v86 = vsel %vm25, %v85, -inf
  %87 = vmax.xlane.f32.xlu0 %v86
  %v88 = vpop.xlane.xlu0 %87
  %v89 = vsub.f32 %v85, %v88
  %v90 = vmul.f32 %v89, 1.442695
  %v91 = vpow.pop %v90
  %v92 = vsel %vm25, %v91, 0.0
  %93 = vadd.xlane.f32.xlu0 %v92
  %v94 = vpop.xlane.xlu0 %93
  %v95 = vlog2.pop %v94
  %v96 = vmul.f32 %v95, 0.6931472
  %v97 = vadd.f32 %v88, %v96
  %v98 = vadd.s32 %v40, 8
  %99 = vset.pattern.permute.xlu0 1
  %100 = vperm.xlu0 %99, %v98
  %v101 = vpop.permute.xlu0 %100
  %vm102 = vcmp.eq.s32.totalorder %v14, %v101
  %v103 = vsel %vm102, %v11, 0.0
  %v104 = vsel %vm25, %v103, 0.0
  %105 = vadd.xlane.f32.xlu0 %v104
  %v106 = vpop.xlane.xlu0 %105
  %v107 = vsub.f32 %v97, %v106
  %v108 = vsel %vm39, %v107, 0.0
  %110 = vrot.lane.b32.xlu0 %v108, 127
  %v111 = vpop.permute.xlu0 %110
  %v113 = vsel %vm51, %v111, 0.0
  %114 = vadd.xlane.f32.xlu0 %v113
  %v115 = vpop.xlane.xlu0 %114
  %v116 = vrot.slane %v115, 4
  %v117 = vadd.f32 %v115, %v116
  %v118 = vrot.slane %v117, 2
  %v119 = vadd.f32 %v117, %v118
  %v120 = vrot.slane %v119, 1
  %v121 = vadd.f32 %v119, %v120
  %s122 = vtos %v121
  %124 = vrot.lane.b32.xlu0 %v62, 127
  %v125 = vpop.permute.xlu0 %124
  %v127 = vsel %vm51, %v125, 0.0
  %128 = vadd.xlane.f32.xlu0 %v127
  %v129 = vpop.xlane.xlu0 %128
  %v130 = vrot.slane %v129, 4
  %v131 = vadd.f32 %v129, %v130
  %v132 = vrot.slane %v131, 2
  %v133 = vadd.f32 %v131, %v132
  %v134 = vrot.slane %v133, 1
  %v135 = vadd.f32 %v133, %v134
  %s136 = vtos %v135
  %vm137 = vcmp.eq.s32.totalorder %v14, 1
  %vm138 = vmand %vm73, %vm137
  %v139 = vstv %s122
  %v140 = vsel %vm138, %v139, %v81
  %vm141 = vmand %vm78, %vm137
  %v142 = vstv %s136
  %v143 = vsel %vm141, %v142, %v140
  %vm144 = vcmp.ge.s32.totalorder %v14, 24
  %vm145 = vcmp.lt.s32.totalorder %v14, 56
  %vm146 = vmand %vm144, %vm145
  %v147 = vsel %vm146, %v11, -inf
  %v148 = vsel %vm25, %v147, -inf
  %149 = vmax.xlane.f32.xlu0 %v148
  %v150 = vpop.xlane.xlu0 %149
  %v151 = vsub.f32 %v147, %v150
  %v152 = vmul.f32 %v151, 1.442695
  %v153 = vpow.pop %v152
  %v154 = vsel %vm25, %v153, 0.0
  %155 = vadd.xlane.f32.xlu0 %v154
  %v156 = vpop.xlane.xlu0 %155
  %v157 = vlog2.pop %v156
  %v158 = vmul.f32 %v157, 0.6931472
  %v159 = vadd.f32 %v150, %v158
  %v160 = vadd.s32 %v40, 24
  %161 = vset.pattern.permute.xlu0 2
  %162 = vperm.xlu0 %161, %v160
  %v163 = vpop.permute.xlu0 %162
  %vm164 = vcmp.eq.s32.totalorder %v14, %v163
  %v165 = vsel %vm164, %v11, 0.0
  %v166 = vsel %vm25, %v165, 0.0
  %167 = vadd.xlane.f32.xlu0 %v166
  %v168 = vpop.xlane.xlu0 %167
  %v169 = vsub.f32 %v159, %v168
  %v170 = vsel %vm39, %v169, 0.0
  %172 = vrot.lane.b32.xlu0 %v170, 126
  %v173 = vpop.permute.xlu0 %172
  %v175 = vsel %vm51, %v173, 0.0
  %176 = vadd.xlane.f32.xlu0 %v175
  %v177 = vpop.xlane.xlu0 %176
  %v178 = vrot.slane %v177, 4
  %v179 = vadd.f32 %v177, %v178
  %v180 = vrot.slane %v179, 2
  %v181 = vadd.f32 %v179, %v180
  %v182 = vrot.slane %v181, 1
  %v183 = vadd.f32 %v181, %v182
  %s184 = vtos %v183
  %185 = vrot.lane.b32.xlu0 %v62, 126
  %v186 = vpop.permute.xlu0 %185
  %v188 = vsel %vm51, %v186, 0.0
  %189 = vadd.xlane.f32.xlu0 %v188
  %v190 = vpop.xlane.xlu0 %189
  %v191 = vrot.slane %v190, 4
  %v192 = vadd.f32 %v190, %v191
  %v193 = vrot.slane %v192, 2
  %v194 = vadd.f32 %v192, %v193
  %v195 = vrot.slane %v194, 1
  %v196 = vadd.f32 %v194, %v195
  %s197 = vtos %v196
  %vm198 = vcmp.eq.s32.totalorder %v14, 2
  %vm199 = vmand %vm73, %vm198
  %v200 = vstv %s184
  %v201 = vsel %vm199, %v200, %v143
  %vm202 = vmand %vm78, %vm198
  %v203 = vstv %s197
  %v204 = vsel %vm202, %v203, %v201
  %205 = vst [vmem:[%s2] sm:$0xff] %v204
  // Predicated region
  $region10: #{_fused_multi_domain_ce.1} parent=0 // pred_check
    _
  $region11: #{_fused_multi_domain_ce.1} parent=0 // pred_check_branch
    %207 = sbr.rel (0) target = $region13
  $region12: #{_fused_multi_domain_ce.1} parent=0 // pred_region
    _
  $region13: #{_fused_multi_domain_ce.1} parent=0 // pred_fallthru
    _
  // Predicated region
  $region14: #{_fused_multi_domain_ce.1} parent=0 // pred_check
    _
  $region15: #{_fused_multi_domain_ce.1} parent=0 // pred_check_branch
    %209 = sbr.rel (0) target = $region17
  $region16: #{_fused_multi_domain_ce.1} parent=0 // pred_region
    _
  $region17: #{_fused_multi_domain_ce.1} parent=0 // pred_fallthru
    _

</llo_original>
